<compile_context>
chip_gen: v5e
topology: v5e:2x2
jax: 0.10.0
libtpu: 0.0.40
codegen_flags: <defaults>
</compile_context>

<pallas_src>
import functools

import jax
import jax.numpy as jnp
from jax import lax
from jax.experimental import pallas as pl
from jax.experimental.pallas import tpu as pltpu

SELU_ALPHA = 1.6732632423543772
SELU_SCALE = 1.0507009873554805
L2_EPS = 1e-12       # F.normalize default eps
BN_EPS = 1e-5        # BatchNorm1d default eps
LANES = 128          # lane-dense width for the fused projection / output
NEG_BIG = -1e30      # additive off-block mask (exp underflows to exactly 0)


# ------------------------------ Pallas kernel ------------------------------ #

def _gat_fused_kernel(x_ref, slab_ref, masks_ref, out_ref, *, out_dim):
    """Whole GraphAttentionLayer forward for all bs*node rows in one invocation.

    x_ref     : (N, in_dim)                     N = bs*node
    slab_ref  : (out_dim + in_dim + 3, LANES)   [pad | Wfused | bfused | bn_w | bn_b]
    masks_ref : (2, N, N)                       [multiplicative mask, additive mask]
    out_ref   : (N, LANES)                      columns [0, out_dim) hold the result
    """
    n_rows, in_dim = x_ref.shape
    r0 = out_dim
    r1 = out_dim + in_dim

    pad_w = slab_ref[0:out_dim, :]          # (out_dim, LANES)  == [I | 0]
    w     = slab_ref[r0:r1, :]              # (in_dim, LANES)   [q | k | g*v | proj | 0]
    b     = slab_ref[r1:r1 + 1, :]          # (1, LANES)
    bn_w  = slab_ref[r1 + 1:r1 + 2, :]      # (1, LANES)
    bn_b  = slab_ref[r1 + 2:r1 + 3, :]      # (1, LANES)

    # One lane-dense MXU push over all rows: [q | k | gamma*v | proj | zeros].
    qkvp = jnp.dot(x_ref[...], w, preferred_element_type=jnp.float32) + b

    q    = qkvp[:, 0 * out_dim:1 * out_dim]
    k    = qkvp[:, 1 * out_dim:2 * out_dim]
    v    = qkvp[:, 2 * out_dim:3 * out_dim]      # already scaled by gamma
    proj = qkvp[:, 3 * out_dim:4 * out_dim]

    # F.normalize(dim=-1): x * rsqrt(max(sum(x^2), eps^2)) == x / max(||x||, eps)
    qn = q * lax.rsqrt(jnp.maximum(jnp.sum(q * q, axis=-1, keepdims=True),
                                   L2_EPS * L2_EPS))
    kn = k * lax.rsqrt(jnp.maximum(jnp.sum(k * k, axis=-1, keepdims=True),
                                   L2_EPS * L2_EPS))

    # One 2D (N, N) attention matmul; batch structure and the (j - i + 0.5*I)
    # divisor are folded into host-precomputed block masks:
    #   on-block : logits = (s + 1) * 1/(j - i + 0.5*eye)
    #   off-block: logits = -1e30  (softmax weight is exactly 0)
    s = jnp.einsum("nd,md->nm", qn, kn, preferred_element_type=jnp.float32)
    logits = (s + 1.0) * masks_ref[0] + masks_ref[1]

    # Numerically-stable softmax with an EXACT divide (the approximate EUP
    # reciprocal previously blew the tolerance).
    logits = logits - jnp.max(logits, axis=-1, keepdims=True)
    e = jnp.exp(logits)
    att = e / jnp.sum(e, axis=-1, keepdims=True)

    # att @ (gamma*v), residual mix with the grouped-conv projection.
    av = jnp.dot(att, v, preferred_element_type=jnp.float32)
    pre = proj + av                                               # (N, out_dim)

    # Lane-dense pad to 128 columns via a tiny MXU matmul with [I | 0]; keeps
    # the BN math and the final store unmasked (no vst.msk partial stores).
    pre = jnp.dot(pre, pad_w, preferred_element_type=jnp.float32)  # (N, LANES)

    # BatchNorm1d (training-mode biased batch stats over all bs*node rows) + SELU.
    # Padded columns are all-zero -> stats 0, bn scale/bias 0 -> output 0.
    # TODO(synk): running_mean / running_var buffer updates (a train-mode side
    # effect of nn.BatchNorm1d) are not tracked; output uses batch stats only.
    inv_n = 1.0 / n_rows
    mean = jnp.sum(pre, axis=0, keepdims=True) * inv_n
    c = pre - mean
    var = jnp.sum(c * c, axis=0, keepdims=True) * inv_n
    y = c * lax.rsqrt(var + BN_EPS) * bn_w + bn_b
    out_ref[...] = SELU_SCALE * jnp.where(y > 0, y, SELU_ALPHA * (jnp.exp(y) - 1.0))


# ------------------- host-side constant assembly (hoisted) ------------------ #

def prepare_gat_params(params, bs, node):
    """Once-per-parameter-update assembly of the kernel constants.

    Hoisted out of the per-call path (the scatter/concat/pad would otherwise be
    re-emitted every forward call and cost as much as the kernel at this size).
    Must be re-run if bs or node change (the block mask is shape-baked).
    """
    out_dim, in_dim = params["wq"].shape
    assert in_dim % out_dim == 0, "grouped conv requires in_dim % out_dim == 0"
    assert 4 * out_dim <= LANES, "fused projection must fit in 128 lanes"
    gsize = in_dim // out_dim
    gamma = params["gamma"][0]

    # Grouped Conv1d(k=1, groups=out_dim) folded into a block-diagonal dense
    # (in_dim, out_dim) weight (MXU-trivial at these sizes).
    w_conv_flat = params["w_conv"].reshape(-1)
    wg = jnp.zeros((in_dim, out_dim), jnp.float32).at[
        jnp.arange(in_dim), jnp.arange(in_dim) // gsize].set(w_conv_flat)

    # Fused [q | k | gamma*v | proj] weight/bias, zero-padded to 128 lanes.
    # gamma*(att@v) == att@(x@(gamma*Wv) + gamma*bv), so gamma never enters the
    # kernel.
    w_fused = jnp.concatenate(
        [params["wq"].T, params["wk"].T, gamma * params["wv"].T, wg], axis=1)
    w_fused = jnp.pad(w_fused, ((0, 0), (0, LANES - 4 * out_dim)))
    b_fused = jnp.concatenate(
        [params["bq"], params["bk"], gamma * params["bv"], params["b_conv"],
         jnp.zeros((LANES - 4 * out_dim,), jnp.float32)])

    bn_w = jnp.concatenate([params["bn_w"], jnp.zeros((LANES - out_dim,), jnp.float32)])
    bn_b = jnp.concatenate([params["bn_b"], jnp.zeros((LANES - out_dim,), jnp.float32)])

    # (out_dim, LANES) = [I | 0]: used in-kernel to pad `pre` to 128 lanes.
    pad_mat = jnp.eye(out_dim, LANES, dtype=jnp.float32)

    # Single constants slab -> ONE DMA:  [pad | W | b | bn_w | bn_b]
    slab = jnp.concatenate(
        [pad_mat, w_fused, b_fused[None], bn_w[None], bn_b[None]], axis=0)

    # Block masks for the single 2D (bs*node, bs*node) attention matmul:
    #  mult: block-diagonal reciprocal of (j - i + 0.5*eye), 0 off-block
    #  add : 0 on-block, -1e30 off-block
    a = jnp.arange(node, dtype=jnp.float32)
    bmat = a[None, :] - a[:, None] + 0.5 * jnp.eye(node, dtype=jnp.float32)
    eye_b = jnp.eye(bs, dtype=jnp.float32)
    mult = jnp.kron(eye_b, 1.0 / bmat)
    add = (1.0 - jnp.kron(eye_b, jnp.ones((node, node), jnp.float32))) * NEG_BIG
    masks = jnp.stack([mult, add], axis=0)               # (2, bs*node, bs*node)

    return {"slab": slab, "masks": masks, "out_dim": int(out_dim),
            "in_dim": int(in_dim), "bs": int(bs), "node": int(node)}


# ------------------------------ host wrapper ------------------------------- #

def graph_attention_layer(x, prep):
    bs, node, in_dim = x.shape
    assert (bs, node, in_dim) == (prep["bs"], prep["node"], prep["in_dim"])
    out_dim = prep["out_dim"]
    slab, masks = prep["slab"], prep["masks"]
    n = bs * node
    x2d = x.reshape(n, in_dim)          # layout-free host reshape (last dim kept)

    # Single invocation: at bs*node = 16 everything is fixed-overhead bound, so
    # one grid step / 3 input DMAs / lane-dense operands is the fast layout.
    # TODO(synk): on scale-up add a parallel row-tile grid axis (v7x: 2 TCs),
    # tile the node axis with an online-softmax inner loop, accumulate BN
    # sum/sum-sq across tiles, and consider bf16 matmul operands (v6e/v7x);
    # size VMEM against 64 MiB on v7x, not 128 MiB.
    out = pl.pallas_call(
        functools.partial(_gat_fused_kernel, out_dim=out_dim),
        out_shape=jax.ShapeDtypeStruct((n, LANES), jnp.float32),
        grid_spec=pltpu.PrefetchScalarGridSpec(
            num_scalar_prefetch=0,
            grid=(1,),
            in_specs=[
                pl.BlockSpec((n, in_dim), lambda i: (0, 0)),
                pl.BlockSpec(slab.shape, lambda i: (0, 0)),
                pl.BlockSpec((2, n, n), lambda i: (0, 0, 0)),
            ],
            out_specs=pl.BlockSpec((n, LANES), lambda i: (0, 0)),
        ),
        compiler_params=pltpu.CompilerParams(
            dimension_semantics=("arbitrary",)),
    )(x2d, slab, masks)

    return out[:, :out_dim].reshape(bs, node, out_dim)


# --------------------------- pure-JAX reference ----------------------------- #

def reference(x, params):
    bs, node, in_dim = x.shape
    out_dim = params["wq"].shape[0]
    gsize = in_dim // out_dim

    def l2n(t):
        return t / jnp.maximum(jnp.linalg.norm(t, axis=-1, keepdims=True), L2_EPS)

    q = l2n(x @ params["wq"].T + params["bq"])
    k = l2n(x @ params["wk"].T + params["bk"])
    att = jnp.einsum("bnd,bmd->bnm", q, k)
    a = jnp.arange(node, dtype=jnp.float32)
    bmat = a[None, :] - a[:, None] + 0.5 * jnp.eye(node, dtype=jnp.float32)
    att = jax.nn.softmax((att + 1.0) / bmat, axis=-1)

    v = x @ params["wv"].T + params["bv"]
    av = jnp.matmul(att, v)

    xg = x.reshape(bs, node, out_dim, gsize)
    proj = jnp.einsum("bnog,og->bno", xg, params["w_conv"].reshape(out_dim, gsize))
    proj = proj + params["b_conv"]
    pre = proj + params["gamma"][0] * av

    flat = pre.reshape(-1, out_dim)
    mean = flat.mean(axis=0)
    var = flat.var(axis=0)            # biased, as BatchNorm uses for normalization
    y = (flat - mean) / jnp.sqrt(var + BN_EPS) * params["bn_w"] + params["bn_b"]
    y = y.reshape(bs, node, out_dim)
    return SELU_SCALE * jnp.where(y > 0, y, SELU_ALPHA * (jnp.exp(y) - 1.0))


# ---------------------------------- main ------------------------------------ #

if __name__ == "__main__":
    bs, node, in_dim, out_dim = 2, 8, 32, 16      # in_dim % out_dim == 0 (groups)
    gsize = in_dim // out_dim

    key = jax.random.PRNGKey(0)
    ks = jax.random.split(key, 9)

    params = {
        "wq": jax.random.normal(ks[0], (out_dim, in_dim), jnp.float32) * 0.1,
        "bq": jax.random.normal(ks[1], (out_dim,), jnp.float32) * 0.1,
        "wk": jax.random.normal(ks[2], (out_dim, in_dim), jnp.float32) * 0.1,
        "bk": jax.random.normal(ks[3], (out_dim,), jnp.float32) * 0.1,
        "wv": jax.random.normal(ks[4], (out_dim, in_dim), jnp.float32) * 0.1,
        "bv": jax.random.normal(ks[5], (out_dim,), jnp.float32) * 0.1,
        # Conv1d weight shape (out_dim, in_dim//groups, 1) -> squeeze kernel dim
        "w_conv": jax.random.normal(ks[6], (out_dim, gsize), jnp.float32) * 0.1,
        "b_conv": jax.random.normal(ks[7], (out_dim,), jnp.float32) * 0.1,
        # PyTorch inits gamma=0; use a nonzero deterministic value so the
        # attention path is actually exercised in this synthetic test.
        "gamma": jnp.array([0.3], jnp.float32),
        "bn_w": jnp.ones((out_dim,), jnp.float32),    # BatchNorm1d default init
        "bn_b": jnp.zeros((out_dim,), jnp.float32),
    }

    x = jax.random.normal(ks[8], (bs, node, in_dim), jnp.float32)

    prep = prepare_gat_params(params, bs, node)   # once per parameter update
    out = jax.block_until_ready(graph_attention_layer(x, prep))

    ref = reference(x, params)
    assert out.shape == (bs, node, out_dim)
    err = jnp.max(jnp.abs(out - ref))
    assert jnp.allclose(out, ref, atol=1e-3, rtol=1e-3), f"max abs err {err}"

    print("KERNEL_OK")
</pallas_src>

<mosaic_0001>
module attributes {stable_mosaic.version = 11 : i64} {
  func.func @_gat_fused_kernel(%arg0: i32, %arg1: memref<16x32xf32, #tpu.memory_space<vmem>>, %arg2: memref<51x128xf32, #tpu.memory_space<vmem>>, %arg3: memref<2x16x16xf32, #tpu.memory_space<vmem>>, %arg4: memref<16x128xf32, #tpu.memory_space<vmem>>) attributes {dimension_semantics = [#tpu.dimension_semantics<arbitrary>], iteration_bounds = array<i64: 1>, scalar_prefetch = 0 : i64, scratch_operands = 0 : i64, tpu.core_type = #tpu.core_type<tc>, window_params = [{pipeline_mode = #tpu.pipeline_mode<synchronous>, transform_indices = @transform_0, window_bounds = array<i64: 16, 32>}, {pipeline_mode = #tpu.pipeline_mode<synchronous>, transform_indices = @transform_1, window_bounds = array<i64: 51, 128>}, {pipeline_mode = #tpu.pipeline_mode<synchronous>, transform_indices = @transform_2, window_bounds = array<i64: 2, 16, 16>}, {pipeline_mode = #tpu.pipeline_mode<synchronous>, transform_indices = @transform_3, window_bounds = array<i64: 16, 128>}]} {
    %c0 = arith.constant 0 : index
    %c0_0 = arith.constant 0 : index
    %0 = vector.load %arg2[%c0, %c0_0] : memref<51x128xf32, #tpu.memory_space<vmem>>, vector<16x128xf32>
    %c16 = arith.constant 16 : index
    %c0_1 = arith.constant 0 : index
    %1 = vector.load %arg2[%c16, %c0_1] : memref<51x128xf32, #tpu.memory_space<vmem>>, vector<32x128xf32>
    %c48 = arith.constant 48 : index
    %c0_2 = arith.constant 0 : index
    %2 = vector.load %arg2[%c48, %c0_2] : memref<51x128xf32, #tpu.memory_space<vmem>>, vector<1x128xf32>
    %c49 = arith.constant 49 : index
    %c0_3 = arith.constant 0 : index
    %3 = vector.load %arg2[%c49, %c0_3] : memref<51x128xf32, #tpu.memory_space<vmem>>, vector<1x128xf32>
    %c50 = arith.constant 50 : index
    %c0_4 = arith.constant 0 : index
    %4 = vector.load %arg2[%c50, %c0_4] : memref<51x128xf32, #tpu.memory_space<vmem>>, vector<1x128xf32>
    %c0_5 = arith.constant 0 : index
    %c0_6 = arith.constant 0 : index
    %5 = vector.load %arg1[%c0_5, %c0_6] : memref<16x32xf32, #tpu.memory_space<vmem>>, vector<16x32xf32>
    %cst = arith.constant dense<0.000000e+00> : vector<16x128xf32>
    %6 = tpu.matmul %5, %1, %cst {dimension_numbers = #tpu.dot_dimension_numbers<[1], [0], [0], [1], [0, 0, 1, 1], [], []>} : vector<16x32xf32>, vector<32x128xf32>, vector<16x128xf32> -> vector<16x128xf32>
    %7 = vector.broadcast %2 : vector<1x128xf32> to vector<16x128xf32>
    %8 = arith.addf %6, %7 : vector<16x128xf32>
    %9 = vector.extract_strided_slice %8 {offsets = [0, 0], sizes = [16, 16], strides = [1, 1]} : vector<16x128xf32> to vector<16x16xf32>
    %10 = vector.extract_strided_slice %8 {offsets = [0, 16], sizes = [16, 16], strides = [1, 1]} : vector<16x128xf32> to vector<16x16xf32>
    %11 = vector.extract_strided_slice %8 {offsets = [0, 32], sizes = [16, 16], strides = [1, 1]} : vector<16x128xf32> to vector<16x16xf32>
    %12 = vector.extract_strided_slice %8 {offsets = [0, 48], sizes = [16, 16], strides = [1, 1]} : vector<16x128xf32> to vector<16x16xf32>
    %13 = arith.mulf %9, %9 : vector<16x16xf32>
    %cst_7 = arith.constant dense<0.000000e+00> : vector<16xf32>
    %14 = vector.multi_reduction <add>, %13, %cst_7 [1] : vector<16x16xf32> to vector<16xf32>
    %15 = vector.shape_cast %14 : vector<16xf32> to vector<16x1xf32>
    %cst_8 = arith.constant 1.000000e-24 : f32
    %16 = vector.broadcast %cst_8 : f32 to vector<16x1xf32>
    %17 = arith.maximumf %15, %16 : vector<16x1xf32>
    %18 = math.rsqrt %17 : vector<16x1xf32>
    %19 = vector.broadcast %18 : vector<16x1xf32> to vector<16x16xf32>
    %20 = arith.mulf %9, %19 : vector<16x16xf32>
    %21 = arith.mulf %10, %10 : vector<16x16xf32>
    %cst_9 = arith.constant dense<0.000000e+00> : vector<16xf32>
    %22 = vector.multi_reduction <add>, %21, %cst_9 [1] : vector<16x16xf32> to vector<16xf32>
    %23 = vector.shape_cast %22 : vector<16xf32> to vector<16x1xf32>
    %cst_10 = arith.constant 1.000000e-24 : f32
    %24 = vector.broadcast %cst_10 : f32 to vector<16x1xf32>
    %25 = arith.maximumf %23, %24 : vector<16x1xf32>
    %26 = math.rsqrt %25 : vector<16x1xf32>
    %27 = vector.broadcast %26 : vector<16x1xf32> to vector<16x16xf32>
    %28 = arith.mulf %10, %27 : vector<16x16xf32>
    "tpu.trace_start"() <{level = 10 : i32, message = "nd,md->nm"}> : () -> ()
    %cst_11 = arith.constant dense<0.000000e+00> : vector<16x16xf32>
    %29 = tpu.matmul %20, %28, %cst_11 {dimension_numbers = #tpu.dot_dimension_numbers<[1], [1], [0], [0], [0, 0, 1, 0], [], []>} : vector<16x16xf32>, vector<16x16xf32>, vector<16x16xf32> -> vector<16x16xf32>
    "tpu.trace_stop"() : () -> ()
    %cst_12 = arith.constant 1.000000e+00 : f32
    %30 = vector.broadcast %cst_12 : f32 to vector<16x16xf32>
    %31 = arith.addf %29, %30 : vector<16x16xf32>
    %c0_13 = arith.constant 0 : index
    %c0_14 = arith.constant 0 : index
    %c0_15 = arith.constant 0 : index
    %32 = vector.load %arg3[%c0_13, %c0_14, %c0_15] : memref<2x16x16xf32, #tpu.memory_space<vmem>>, vector<1x16x16xf32>
    %33 = vector.shape_cast %32 : vector<1x16x16xf32> to vector<16x16xf32>
    %34 = arith.mulf %31, %33 : vector<16x16xf32>
    %c1 = arith.constant 1 : index
    %c0_16 = arith.constant 0 : index
    %c0_17 = arith.constant 0 : index
    %35 = vector.load %arg3[%c1, %c0_16, %c0_17] : memref<2x16x16xf32, #tpu.memory_space<vmem>>, vector<1x16x16xf32>
    %36 = vector.shape_cast %35 : vector<1x16x16xf32> to vector<16x16xf32>
    %37 = arith.addf %34, %36 : vector<16x16xf32>
    %cst_18 = arith.constant dense<0xFF800000> : vector<16xf32>
    %38 = vector.multi_reduction <maximumf>, %37, %cst_18 [1] : vector<16x16xf32> to vector<16xf32>
    %39 = vector.shape_cast %38 : vector<16xf32> to vector<16x1xf32>
    %40 = vector.broadcast %39 : vector<16x1xf32> to vector<16x16xf32>
    %41 = arith.subf %37, %40 : vector<16x16xf32>
    %42 = math.exp %41 : vector<16x16xf32>
    %cst_19 = arith.constant dense<0.000000e+00> : vector<16xf32>
    %43 = vector.multi_reduction <add>, %42, %cst_19 [1] : vector<16x16xf32> to vector<16xf32>
    %44 = vector.shape_cast %43 : vector<16xf32> to vector<16x1xf32>
    %45 = vector.broadcast %44 : vector<16x1xf32> to vector<16x16xf32>
    %46 = arith.divf %42, %45 : vector<16x16xf32>
    %cst_20 = arith.constant dense<0.000000e+00> : vector<16x16xf32>
    %47 = tpu.matmul %46, %11, %cst_20 {dimension_numbers = #tpu.dot_dimension_numbers<[1], [0], [0], [1], [0, 0, 1, 1], [], []>} : vector<16x16xf32>, vector<16x16xf32>, vector<16x16xf32> -> vector<16x16xf32>
    %48 = arith.addf %12, %47 : vector<16x16xf32>
    %cst_21 = arith.constant dense<0.000000e+00> : vector<16x128xf32>
    %49 = tpu.matmul %48, %0, %cst_21 {dimension_numbers = #tpu.dot_dimension_numbers<[1], [0], [0], [1], [0, 0, 1, 1], [], []>} : vector<16x16xf32>, vector<16x128xf32>, vector<16x128xf32> -> vector<16x128xf32>
    %cst_22 = arith.constant dense<0.000000e+00> : vector<128xf32>
    %50 = vector.multi_reduction <add>, %49, %cst_22 [0] : vector<16x128xf32> to vector<128xf32>
    %51 = vector.shape_cast %50 : vector<128xf32> to vector<1x128xf32>
    %cst_23 = arith.constant 6.250000e-02 : f32
    %52 = vector.broadcast %cst_23 : f32 to vector<1x128xf32>
    %53 = arith.mulf %51, %52 : vector<1x128xf32>
    %54 = vector.broadcast %53 : vector<1x128xf32> to vector<16x128xf32>
    %55 = arith.subf %49, %54 : vector<16x128xf32>
    %56 = arith.mulf %55, %55 : vector<16x128xf32>
    %cst_24 = arith.constant dense<0.000000e+00> : vector<128xf32>
    %57 = vector.multi_reduction <add>, %56, %cst_24 [0] : vector<16x128xf32> to vector<128xf32>
    %58 = vector.shape_cast %57 : vector<128xf32> to vector<1x128xf32>
    %cst_25 = arith.constant 6.250000e-02 : f32
    %59 = vector.broadcast %cst_25 : f32 to vector<1x128xf32>
    %60 = arith.mulf %58, %59 : vector<1x128xf32>
    %cst_26 = arith.constant 9.99999974E-6 : f32
    %61 = vector.broadcast %cst_26 : f32 to vector<1x128xf32>
    %62 = arith.addf %60, %61 : vector<1x128xf32>
    %63 = math.rsqrt %62 : vector<1x128xf32>
    %64 = vector.broadcast %63 : vector<1x128xf32> to vector<16x128xf32>
    %65 = arith.mulf %55, %64 : vector<16x128xf32>
    %66 = vector.broadcast %3 : vector<1x128xf32> to vector<16x128xf32>
    %67 = arith.mulf %65, %66 : vector<16x128xf32>
    %68 = vector.broadcast %4 : vector<1x128xf32> to vector<16x128xf32>
    %69 = arith.addf %67, %68 : vector<16x128xf32>
    %cst_27 = arith.constant 0.000000e+00 : f32
    %70 = vector.broadcast %cst_27 : f32 to vector<16x128xf32>
    %71 = arith.cmpf ogt, %69, %70 : vector<16x128xf32>
    %72 = math.exp %69 : vector<16x128xf32>
    %cst_28 = arith.constant 1.000000e+00 : f32
    %73 = vector.broadcast %cst_28 : f32 to vector<16x128xf32>
    %74 = arith.subf %72, %73 : vector<16x128xf32>
    %cst_29 = arith.constant 1.67326319 : f32
    %75 = vector.broadcast %cst_29 : f32 to vector<16x128xf32>
    %76 = arith.mulf %75, %74 : vector<16x128xf32>
    %77 = arith.select %71, %69, %76 : vector<16x128xi1>, vector<16x128xf32>
    %cst_30 = arith.constant 1.05070102 : f32
    %78 = vector.broadcast %cst_30 : f32 to vector<16x128xf32>
    %79 = arith.mulf %78, %77 : vector<16x128xf32>
    %c0_31 = arith.constant 0 : index
    %c0_32 = arith.constant 0 : index
    %80 = vector.load %arg4[%c0_31, %c0_32] : memref<16x128xf32, #tpu.memory_space<vmem>>, vector<16x128xf32>
    tpu.vector_store %arg4[%c0_31, %c0_32], %79 {strides = array<i32>} : memref<16x128xf32, #tpu.memory_space<vmem>>, vector<16x128xf32>,
    return
  }
  func.func @transform_0(%arg0: i32) -> (i32, i32) {
    %c0_i32 = arith.constant 0 : i32
    %c0_i32_0 = arith.constant 0 : i32
    %c0_i32_1 = arith.constant 0 : i32
    return %c0_i32, %c0_i32_0 : i32, i32
  }
  func.func @transform_1(%arg0: i32) -> (i32, i32) {
    %c0_i32 = arith.constant 0 : i32
    %c0_i32_0 = arith.constant 0 : i32
    %c0_i32_1 = arith.constant 0 : i32
    return %c0_i32, %c0_i32_0 : i32, i32
  }
  func.func @transform_2(%arg0: i32) -> (i32, i32, i32) {
    %c0_i32 = arith.constant 0 : i32
    %c0_i32_0 = arith.constant 0 : i32
    %c0_i32_1 = arith.constant 0 : i32
    %c0_i32_2 = arith.constant 0 : i32
    return %c0_i32, %c0_i32_0, %c0_i32_1 : i32, i32, i32
  }
  func.func @transform_3(%arg0: i32) -> (i32, i32) {
    %c0_i32 = arith.constant 0 : i32
    %c0_i32_0 = arith.constant 0 : i32
    %c0_i32_1 = arith.constant 0 : i32
    return %c0_i32, %c0_i32_0 : i32, i32
  }
}

</mosaic_0001>

<llo_original>
// kernel: tpu_custom_call.1
$region0: #{tpu_custom_call.1}
  #allocation0 [shape = 'u32[]', space=smem, size = 0x4, offset = 0x4, fixed_abs, tag = 'smem constant byte address 0x4 - core index']
  #allocation1 [shape = 'u32[72,128]{1,0:T(1,128)}', space=vmem, size = 0x9000, scoped, tag = 'internal scratch']
  %s0 = inlined_call_operand.hbm [shape: f32[16,32], index: 0, kind: input, shape index: {}]
  %s1 = inlined_call_operand.hbm [shape: f32[51,128], index: 1, kind: input, shape index: {}]
  %s2 = inlined_call_operand.hbm [shape: f32[2,16,16], index: 2, kind: input, shape index: {}]
  %s3 = inlined_call_operand.hbm [shape: f32[16,128], index: 3, kind: output, shape index: {}]
  %s4 = sld [smem:[#allocation0]]
  $region34: #{tpu_custom_call.1} parent=0
    _
  %s6 = ssub.s32 1, %s4
  %s7 = scalar_select 0, %s6, %s4
  $region1: #{tpu_custom_call.1} parent=0
    #allocation2 [shape = 'u8[8192]{0}', space=vmem, size = 0x2000, scoped, tag = 'input window, operand 0, single buffered']
    #allocation3 [shape = 's32[1]{0}', space=sflag, size = 0x4, scoped, tag = 'scoped memory for tpu_custom_call.1']
    #allocation4 [shape = 's32[1]{0}', space=sflag, size = 0x4, scoped, tag = 'scoped memory for tpu_custom_call.1']
    #allocation5 [shape = 'u8[28672]{0}', space=vmem, size = 0x7000, scoped, tag = 'input window, operand 1, single buffered']
    #allocation6 [shape = 's32[1]{0}', space=sflag, size = 0x4, scoped, tag = 'scoped memory for tpu_custom_call.1']
    #allocation7 [shape = 'u8[16384]{0}', space=vmem, size = 0x4000, scoped, tag = 'input window, operand 2, single buffered']
    #allocation8 [shape = 'u8[8192]{0}', space=vmem, size = 0x2000, scoped, tag = 'output window, operand 0, single buffered']
    %8 = vsyncpa [#allocation3], 0
    %9 = vsyncpa [#allocation6], 0
    %10 = vsyncpa [#allocation4], 0
    // Predicated region
    $region2: #{tpu_custom_call.1} parent=1 // pred_check
      _
    $region3: #{tpu_custom_call.1} parent=1 // pred_check_branch
      %12 = sbr.rel (0) target = $region5
    $region4: #{tpu_custom_call.1} parent=1 // pred_region
      %14 = vsyncadd [#allocation3], 0
      %s15 = sshll.u32 %s0, 4
      %s16 = int_to_ptr.hbm [resolvable:$true] %s15
      %s17 = sshll.u32 [#allocation2], 4
      %s18 = int_to_ptr.vmem [resolvable:$true] %s17
      %23 = dma.hbm_to_vmem [thread:$0]  %s16, 256, %s18, [#allocation3], 128, 128, 8
    $region5: #{tpu_custom_call.1} parent=1 // pred_fallthru
      _
    // Predicated region
    $region6: #{tpu_custom_call.1} parent=1 // pred_check
      _
    $region7: #{tpu_custom_call.1} parent=1 // pred_check_branch
      %25 = sbr.rel (0) target = $region9
    $region8: #{tpu_custom_call.1} parent=1 // pred_region
      %27 = vsyncadd [#allocation6], 0
      %s28 = sshll.u32 %s1, 4
      %s29 = int_to_ptr.hbm [resolvable:$true] %s28
      %s30 = sshll.u32 [#allocation5], 4
      %s31 = int_to_ptr.vmem [resolvable:$true] %s30
      %36 = dma.hbm_to_vmem [thread:$0]  %s29, 896, %s31, [#allocation6], 128, 128, 8
    $region9: #{tpu_custom_call.1} parent=1 // pred_fallthru
      _
    // Predicated region
    $region10: #{tpu_custom_call.1} parent=1 // pred_check
      _
    $region11: #{tpu_custom_call.1} parent=1 // pred_check_branch
      %38 = sbr.rel (0) target = $region13
    $region12: #{tpu_custom_call.1} parent=1 // pred_region
      %40 = vsyncadd [#allocation6], 0
      %s41 = sshll.u32 %s2, 4
      %s42 = int_to_ptr.hbm [resolvable:$true] %s41
      %s43 = sshll.u32 [#allocation7], 4
      %s44 = int_to_ptr.vmem [resolvable:$true] %s43
      %49 = dma.hbm_to_vmem [thread:$0]  %s42, 512, %s44, [#allocation6], 128, 128, 8
    $region13: #{tpu_custom_call.1} parent=1 // pred_fallthru
      _
    // Predicated region
    $region14: #{tpu_custom_call.1} parent=1 // pred_check
      _
    $region15: #{tpu_custom_call.1} parent=1 // pred_check_branch
      %51 = sbr.rel (0) target = $region17
    $region16: #{tpu_custom_call.1} parent=1 // pred_region
      %53 = dma.done [#allocation3], 256
    $region17: #{tpu_custom_call.1} parent=1 // pred_fallthru
      _
    // Predicated region
    $region18: #{tpu_custom_call.1} parent=1 // pred_check
      _
    $region19: #{tpu_custom_call.1} parent=1 // pred_check_branch
      %55 = sbr.rel (0) target = $region21
    $region20: #{tpu_custom_call.1} parent=1 // pred_region
      %57 = dma.done [#allocation6], 896
    $region21: #{tpu_custom_call.1} parent=1 // pred_fallthru
      _
    // Predicated region
    $region22: #{tpu_custom_call.1} parent=1 // pred_check
      _
    $region23: #{tpu_custom_call.1} parent=1 // pred_check_branch
      %59 = sbr.rel (0) target = $region25
    $region24: #{tpu_custom_call.1} parent=1 // pred_region
      %61 = dma.done [#allocation6], 512
    $region25: #{tpu_custom_call.1} parent=1 // pred_fallthru
      _
    %v62 = vld [vmem:[#allocation5] sm:$0xff]
    %v63 = vld [vmem:[#allocation5 + $0x8] sm:$0xff]
    %v64 = vld [vmem:[#allocation5 + $0x10] sm:$0xff]
    %v65 = vld [vmem:[#allocation5 + $0x18] sm:$0xff]
    %v66 = vld [vmem:[#allocation5 + $0x20] sm:$0xff]
    %v67 = vld [vmem:[#allocation5 + $0x28] sm:$0xff]
    %v68 = vld [vmem:[#allocation5 + $0x30] sm:$0x1]
    %v69 = vld [vmem:[#allocation5 + $0x31] sm:$0x1]
    %v70 = vld [vmem:[#allocation5 + $0x32] sm:$0x1]
    %v71 = vld [vmem:[#allocation2] sm:$0xff]
    %v72 = vld [vmem:[#allocation2 + $0x8] sm:$0xff]
    %v73 = vperm.slane %v68, 0
    %vm74 = vcmask 261120
    %v76 = vsel %vm74, %v71, 0
    %v79 = vsel %vm74, %v72, 0
    %81 = vmatpush.msra.mxu0 0.0
    %82 = vmatpush.msra.mxu0 0.0
    %83 = vmatpush.msra.mxu0 0.0
    %84 = vmatpush.msra.mxu0 0.0
    %85 = vmatpush.msra.mxu0 0.0
    %86 = vmatpush.msra.mxu0 0.0
    %87 = vmatpush.msra.mxu0 0.0
    %88 = vmatpush.msra.mxu0 0.0
    %89 = vmatpush.msra.mxu0 0.0
    %90 = vmatpush.msra.mxu0 0.0
    %91 = vmatpush.msra.mxu0 0.0
    %92 = vmatpush.msra.mxu0 0.0
    %93 = vmatpush.msra.mxu0 %v67
    %94 = vmatpush.msra.mxu0 %v66
    %95 = vmatpush.msra.mxu0 %v65
    %96 = vmatpush.msra.mxu0 %v64
    %97 = vmatmul.f32.gmra.mxu0 %v76
    %v98 = vpop.f32.mrf.mxu0
    %v99 = vadd.f32 %v73, %v98
    %100 = vmatmul.f32.gmra.mxu0 %v79
    %v101 = vpop.f32.mrf.mxu0
    %v102 = vadd.f32 %v73, %v101
    %103 = vdwg.mxu0
    %v104 = vmul.f32 %v99, %v99
    %v105 = vmul.f32 %v102, %v102
    %vm106 = vcmask 130048
    %v107 = vsel %vm106, %v104, 0.0
    %108 = vadd.xlane.f32.xlu0 %v107
    %v109 = vpop.xlane.xlu0 %108
    %v110 = vsel %vm106, %v105, 0.0
    %111 = vadd.xlane.f32.xlu0 %v110
    %v112 = vpop.xlane.xlu0 %111
    %v113 = vmax.f32 %v109, 1e-24
    %v114 = vmax.f32 %v112, 1e-24
    %v115 = vrsqrt.pop %v113
    %v116 = vmul.f32 %v115, %v113
    %v117 = vmul.f32 %v116, %v115
    %v118 = vmul.f32 0.5, %v117
    %v119 = vsub.f32 1.5, %v118
    %v120 = vmul.f32 %v115, %v119
    %vm121 = vweird.f32 %v113
    %vm122 = vweird.f32 %v115
    %vm123 = vmor %vm121, %vm122
    %v124 = vsel %vm123, %v115, %v120
    %v125 = vrsqrt.pop %v114
    %v126 = vmul.f32 %v125, %v114
    %v127 = vmul.f32 %v126, %v125
    %v128 = vmul.f32 0.5, %v127
    %v129 = vsub.f32 1.5, %v128
    %v130 = vmul.f32 %v125, %v129
    %vm131 = vweird.f32 %v114
    %vm132 = vweird.f32 %v125
    %vm133 = vmor %vm131, %vm132
    %v134 = vsel %vm133, %v125, %v130
    %v135 = vmul.f32 %v99, %v124
    %v136 = vmul.f32 %v102, %v134
    %139 = vrot.lane.b32.xlu0 %v104, 112
    %v140 = vpop.permute.xlu0 %139
    %141 = vrot.lane.b32.xlu0 %v105, 112
    %v142 = vpop.permute.xlu0 %141
    %v145 = vsel %vm106, %v140, 0.0
    %146 = vadd.xlane.f32.xlu0 %v145
    %v147 = vpop.xlane.xlu0 %146
    %v148 = vsel %vm106, %v142, 0.0
    %149 = vadd.xlane.f32.xlu0 %v148
    %v150 = vpop.xlane.xlu0 %149
    %v151 = vmax.f32 %v147, 1e-24
    %v152 = vmax.f32 %v150, 1e-24
    %v153 = vrsqrt.pop %v151
    %v154 = vmul.f32 %v153, %v151
    %v155 = vmul.f32 %v154, %v153
    %v156 = vmul.f32 0.5, %v155
    %v157 = vsub.f32 1.5, %v156
    %v158 = vmul.f32 %v153, %v157
    %vm159 = vweird.f32 %v151
    %vm160 = vweird.f32 %v153
    %vm161 = vmor %vm159, %vm160
    %v162 = vsel %vm161, %v153, %v158
    %v163 = vrsqrt.pop %v152
    %v164 = vmul.f32 %v163, %v152
    %v165 = vmul.f32 %v164, %v163
    %v166 = vmul.f32 0.5, %v165
    %v167 = vsub.f32 1.5, %v166
    %v168 = vmul.f32 %v163, %v167
    %vm169 = vweird.f32 %v152
    %vm170 = vweird.f32 %v163
    %vm171 = vmor %vm169, %vm170
    %v172 = vsel %vm171, %v163, %v168
    %v173 = vmul.f32 %v99, %v162
    %v174 = vmul.f32 %v102, %v172
    %177 = vrot.lane.b32.xlu0 %v173, 112
    %v178 = vpop.permute.xlu0 %177
    %179 = vrot.lane.b32.xlu0 %v174, 112
    %v180 = vpop.permute.xlu0 %179
    %v182 = vsel %vm106, %v135, 0
    %v185 = vsel %vm106, %v136, 0
    %v187 = vsel %vm106, %v178, 0
    %v189 = vsel %vm106, %v180, 0
    %191 = vmatpush.xpose.msra.mxu0 0.0
    %192 = vmatpush.xpose.msra.mxu0 0.0
    %193 = vmatpush.xpose.msra.mxu0 0.0
    %194 = vmatpush.xpose.msra.mxu0 0.0
    %195 = vmatpush.xpose.msra.mxu0 0.0
    %196 = vmatpush.xpose.msra.mxu0 0.0
    %197 = vmatpush.xpose.msra.mxu0 0.0
    %198 = vmatpush.xpose.msra.mxu0 0.0
    %199 = vmatpush.xpose.msra.mxu0 0.0
    %200 = vmatpush.xpose.msra.mxu0 0.0
    %201 = vmatpush.xpose.msra.mxu0 0.0
    %202 = vmatpush.xpose.msra.mxu0 0.0
    %203 = vmatpush.xpose.msra.mxu0 0.0
    %204 = vmatpush.xpose.msra.mxu0 0.0
    %205 = vmatpush.xpose.msra.mxu0 %v189
    %206 = vmatpush.xpose.msra.mxu0 %v187
    %207 = vmatmul.f32.gmra.mxu0 %v182
    %v208 = vpop.f32.mrf.mxu0
    %v209 = vadd.f32 1.0, %v208
    %210 = vmatmul.f32.gmra.mxu0 %v185
    %v211 = vpop.f32.mrf.mxu0
    %v212 = vadd.f32 1.0, %v211
    %213 = vdwg.mxu0
    %v214 = vld [vmem:[#allocation7] sm:$0xff]
    %v215 = vld [vmem:[#allocation7 + $0x8] sm:$0xff]
    %v216 = vmul.f32 %v209, %v214
    %v217 = vmul.f32 %v212, %v215
    %s218 = scalar_lea.vmem [#allocation7], 16
    %v219 = vld [vmem:[%s218] sm:$0xff]
    %v220 = vld [vmem:[%s218 + $0x8] sm:$0xff]
    %v221 = vadd.f32 %v216, %v219
    %v222 = vadd.f32 %v217, %v220
    %v223 = vsel %vm106, %v221, -inf
    %224 = vmax.xlane.f32.xlu0 %v223
    %v225 = vpop.xlane.xlu0 %224
    %v226 = vsel %vm106, %v222, -inf
    %227 = vmax.xlane.f32.xlu0 %v226
    %v228 = vpop.xlane.xlu0 %227
    %v229 = vsub.f32 %v221, %v225
    %v230 = vsub.f32 %v222, %v228
    %v231 = vmul.f32 %v229, 1.442695
    %v232 = vpow.pop %v231
    %v233 = vmul.f32 %v230, 1.442695
    %v234 = vpow.pop %v233
    %v235 = vsel %vm106, %v232, 0.0
    %236 = vadd.xlane.f32.xlu0 %v235
    %v237 = vpop.xlane.xlu0 %236
    %v238 = vsel %vm106, %v234, 0.0
    %239 = vadd.xlane.f32.xlu0 %v238
    %v240 = vpop.xlane.xlu0 %239
    %v241 = vrcp.pop %v237
    %v242 = vmul.f32 %v237, %v241
    %v243 = vsub.f32 1.0, %v242
    %v244 = vmul.f32 %v241, %v243
    %v245 = vadd.f32 %v241, %v244
    %vm246 = vweird.f32 %v237
    %vm247 = vweird.f32 %v241
    %vm248 = vmor %vm246, %vm247
    %v249 = vsel %vm248, %v241, %v245
    %v250 = vand.u32 2147483647, %v237
    %vm251 = vcmp.eq.f32.partialorder %v250, 8.507059e+37
    %v252 = vand.u32 %v237, 2147483648
    %v253 = vor.u32 1.1754944e-38, %v252
    %v254 = vsel %vm251, %v253, %v249
    %v255 = vmul.f32 %v232, %v254
    %v256 = vrcp.pop %v240
    %v257 = vmul.f32 %v240, %v256
    %v258 = vsub.f32 1.0, %v257
    %v259 = vmul.f32 %v256, %v258
    %v260 = vadd.f32 %v256, %v259
    %vm261 = vweird.f32 %v240
    %vm262 = vweird.f32 %v256
    %vm263 = vmor %vm261, %vm262
    %v264 = vsel %vm263, %v256, %v260
    %v265 = vand.u32 2147483647, %v240
    %vm266 = vcmp.eq.f32.partialorder %v265, 8.507059e+37
    %v267 = vand.u32 %v240, 2147483648
    %v268 = vor.u32 1.1754944e-38, %v267
    %v269 = vsel %vm266, %v268, %v264
    %v270 = vmul.f32 %v234, %v269
    %273 = vrot.lane.b32.xlu0 %v99, 96
    %v274 = vpop.permute.xlu0 %273
    %275 = vrot.lane.b32.xlu0 %v102, 96
    %v276 = vpop.permute.xlu0 %275
    %v280 = vsel %vm106, %v255, 0
    %v283 = vsel %vm106, %v270, 0
    %285 = vmatpush.msra.mxu0 0.0
    %286 = vmatpush.msra.mxu0 0.0
    %287 = vmatpush.msra.mxu0 0.0
    %288 = vmatpush.msra.mxu0 0.0
    %289 = vmatpush.msra.mxu0 0.0
    %290 = vmatpush.msra.mxu0 0.0
    %291 = vmatpush.msra.mxu0 0.0
    %292 = vmatpush.msra.mxu0 0.0
    %293 = vmatpush.msra.mxu0 0.0
    %294 = vmatpush.msra.mxu0 0.0
    %295 = vmatpush.msra.mxu0 0.0
    %296 = vmatpush.msra.mxu0 0.0
    %297 = vmatpush.msra.mxu0 0.0
    %298 = vmatpush.msra.mxu0 0.0
    %299 = vmatpush.msra.mxu0 %v276
    %300 = vmatpush.msra.mxu0 %v274
    %301 = vmatmul.f32.gmra.mxu0 %v280
    %v302 = vpop.f32.mrf.mxu0
    %v303 = vadd.f32 0.0, %v302
    %304 = vmatmul.f32.gmra.mxu0 %v283
    %v305 = vpop.f32.mrf.mxu0
    %v306 = vadd.f32 0.0, %v305
    %307 = vdwg.mxu0
    %310 = vrot.lane.b32.xlu0 %v303, 48
    %v311 = vpop.permute.xlu0 %310
    %312 = vrot.lane.b32.xlu0 %v306, 48
    %v313 = vpop.permute.xlu0 %312
    %v316 = vadd.f32 %v99, %v311
    %v317 = vadd.f32 %v102, %v313
    %320 = vrot.lane.b32.xlu0 %v316, 80
    %v321 = vpop.permute.xlu0 %320
    %322 = vrot.lane.b32.xlu0 %v317, 80
    %v323 = vpop.permute.xlu0 %322
    %v324 = vsel %vm106, %v321, 0
    %v326 = vsel %vm106, %v323, 0
    %328 = vmatpush.msra.mxu0 0.0
    %329 = vmatpush.msra.mxu0 0.0
    %330 = vmatpush.msra.mxu0 0.0
    %331 = vmatpush.msra.mxu0 0.0
    %332 = vmatpush.msra.mxu0 0.0
    %333 = vmatpush.msra.mxu0 0.0
    %334 = vmatpush.msra.mxu0 0.0
    %335 = vmatpush.msra.mxu0 0.0
    %336 = vmatpush.msra.mxu0 0.0
    %337 = vmatpush.msra.mxu0 0.0
    %338 = vmatpush.msra.mxu0 0.0
    %339 = vmatpush.msra.mxu0 0.0
    %340 = vmatpush.msra.mxu0 0.0
    %341 = vmatpush.msra.mxu0 0.0
    %342 = vmatpush.msra.mxu0 %v63
    %343 = vmatpush.msra.mxu0 %v62
    %344 = vmatmul.f32.gmra.mxu0 %v324
    %v345 = vpop.f32.mrf.mxu0
    %v346 = vadd.f32 0.0, %v345
    %347 = vmatmul.f32.gmra.mxu0 %v326
    %v348 = vpop.f32.mrf.mxu0
    %v349 = vadd.f32 0.0, %v348
    %350 = vdwg.mxu0
    %v351 = vadd.f32 %v346, %v349
    %v352 = vrot.slane %v351, 4
    %v353 = vadd.f32 %v351, %v352
    %v354 = vrot.slane %v353, 2
    %v355 = vadd.f32 %v353, %v354
    %v356 = vrot.slane %v355, 1
    %v357 = vadd.f32 %v355, %v356
    %v358 = vmul.f32 %v357, 0.0625
    %v359 = vsub.f32 %v346, %v358
    %v360 = vsub.f32 %v349, %v358
    %v361 = vmul.f32 %v359, %v359
    %v362 = vmul.f32 %v360, %v360
    %v363 = vadd.f32 %v361, %v362
    %v364 = vrot.slane %v363, 4
    %v365 = vadd.f32 %v363, %v364
    %v366 = vrot.slane %v365, 2
    %v367 = vadd.f32 %v365, %v366
    %v368 = vrot.slane %v367, 1
    %v369 = vadd.f32 %v367, %v368
    %v370 = vmul.f32 %v369, 0.0625
    %v371 = vadd.f32 %v370, 1e-05
    %v372 = vrsqrt.pop %v371
    %v373 = vmul.f32 %v372, %v371
    %v374 = vmul.f32 %v373, %v372
    %v375 = vmul.f32 0.5, %v374
    %v376 = vsub.f32 1.5, %v375
    %v377 = vmul.f32 %v372, %v376
    %vm378 = vweird.f32 %v371
    %vm379 = vweird.f32 %v372
    %vm380 = vmor %vm378, %vm379
    %v381 = vsel %vm380, %v372, %v377
    %v382 = vmul.f32 %v359, %v381
    %v383 = vmul.f32 %v360, %v381
    %v384 = vperm.slane %v69, 0
    %v385 = vmul.f32 %v382, %v384
    %v386 = vmul.f32 %v383, %v384
    %v387 = vperm.slane %v70, 0
    %v388 = vadd.f32 %v385, %v387
    %v389 = vadd.f32 %v386, %v387
    %vm390 = vcmp.gt.f32.partialorder %v388, 0.0
    %vm391 = vcmp.gt.f32.partialorder %v389, 0.0
    %v392 = vmul.f32 %v388, 1.442695
    %v393 = vpow.pop %v392
    %v394 = vmul.f32 %v389, 1.442695
    %v395 = vpow.pop %v394
    %v396 = vsub.f32 %v393, 1.0
    %v397 = vsub.f32 %v395, 1.0
    %v398 = vmul.f32 %v396, 1.6732632
    %v399 = vmul.f32 %v397, 1.6732632
    %v400 = vsel %vm390, %v388, %v398
    %v401 = vsel %vm391, %v389, %v399
    %v402 = vmul.f32 %v400, 1.050701
    %v403 = vmul.f32 %v401, 1.050701
    %404 = vst [vmem:[#allocation8] sm:$0xff] %v402
    %405 = vst [vmem:[#allocation8 + $0x8] sm:$0xff] %v403
    // Predicated region
    $region26: #{tpu_custom_call.1} parent=1 // pred_check
      _
    $region27: #{tpu_custom_call.1} parent=1 // pred_check_branch
      %407 = sbr.rel (0) target = $region29
    $region28: #{tpu_custom_call.1} parent=1 // pred_region
      %409 = vsyncadd [#allocation4], 0
      %s410 = sshll.u32 [#allocation8], 4
      %s411 = int_to_ptr.vmem [resolvable:$true] %s410
      %s412 = sshll.u32 %s3, 4
      %s413 = int_to_ptr.hbm [resolvable:$true] %s412
      %418 = dma.vmem_to_hbm [thread:$0]  %s411, 256, %s413, [#allocation4], 128, 128, 8
    $region29: #{tpu_custom_call.1} parent=1 // pred_fallthru
      _
    // Predicated region
    $region30: #{tpu_custom_call.1} parent=1 // pred_check
      _
    $region31: #{tpu_custom_call.1} parent=1 // pred_check_branch
      %420 = sbr.rel (0) target = $region33
    $region32: #{tpu_custom_call.1} parent=1 // pred_region
      %422 = dma.done [#allocation4], 256
    $region33: #{tpu_custom_call.1} parent=1 // pred_fallthru
      _
    %423 = vsyncpa [#allocation3], 1
    %424 = vsyncpa [#allocation6], 1
    %425 = vsyncpa [#allocation4], 1

</llo_original>
